<compile_context>
chip_gen: v7x
topology: tpu7x:2x2x1
jax: 0.10.0
libtpu: 0.0.40
codegen_flags: <defaults>
</compile_context>

<pallas_src>
import functools

import jax
import jax.numpy as jnp
from jax.experimental import pallas as pl
from jax.experimental.pallas import tpu as pltpu


def _round_up(x, m):
    return ((x + m - 1) // m) * m


def _balanced_tile(dim, cap, align):
    """Largest `align`-aligned tile <= ~cap that keeps padding of `dim` minimal."""
    dim_a = _round_up(max(dim, 1), align)
    if dim_a <= cap:
        return dim_a
    ntiles = -(-dim_a // cap)                       # ceil
    return _round_up(-(-dim_a // ntiles), align)    # balanced tile


def _vmem_capacity_bytes():
    try:
        return int(pltpu.get_tpu_info().vmem_capacity_bytes)
    except Exception:
        return 64 << 20  # conservative fallback: v7x per-TensorCore VMEM


def _vmem_tile_budget_bytes():
    # ~40% of physical VMEM for the double-buffered working set:
    #   ~51 MiB on v5e/v6e (128 MiB VMEM), ~25 MiB on v7x (64 MiB per TC).
    return int(_vmem_capacity_bytes() * 0.4)


# ----------------------------------------------------------------------------- kernel


def fc_unit_kernel(x_ref, w_ref, b_ref, o_ref, acc_ref, *, mxu_dtype):
    """One (tm, tn) output tile; K is the last (reduction) grid axis."""
    k = pl.program_id(2)

    @pl.when(k == 0)
    def _():
        acc_ref[...] = jnp.zeros_like(acc_ref)

    # x tile (tm, tk) cast to the MXU dtype in-register; weight tile (tk, tn) is already
    # pre-transposed & pre-cast at parameter-prep time -> plain jnp.dot, f32 accumulation.
    acc_ref[...] += jnp.dot(
        x_ref[...].astype(mxu_dtype), w_ref[...],
        preferred_element_type=jnp.float32,
    )

    @pl.when(k == pl.num_programs(2) - 1)
    def _():
        # Epilogue in f32, applied exactly once after the full K reduction.
        y = acc_ref[...] + b_ref[...]          # (1, tn) bias broadcasts over rows
        y = jnp.maximum(y, 0.0)                # ReLU
        # TODO(synk): training-mode dropout (pltpu.prng_random_bits mask/scale) not emitted;
        #             forward matches module.eval() semantics (dropout == identity).
        o_ref[...] = y.astype(o_ref.dtype)


# ----------------------------------------------------------------------------- param prep (once)


def prepare_fc_unit_params(weight, bias, *, compute_dtype=jnp.bfloat16,
                           tn_cap=512, tk_cap=1024):
    """One-time parameter prep, hoisted out of the per-call path.

    weight: (D_out, D_in) PyTorch layout; bias: (D_out,).
    Returns (w_t, b, meta) where w_t is (K_p, N_p) in `compute_dtype` (pre-transposed,
    zero-padded), b is (1, N_p) f32, and meta = dict(d_out, tn, tk) for the forward wrapper.

    bf16 is the right MXU dtype on v5e/v6e/v7x alike (all bf16-native); use f32 only when
    an exact-f32 GEMM is truly required (several-x slower, 2x HBM/VMEM traffic).
    """
    D_out, D_in = weight.shape
    N_128 = _round_up(D_out, 128)
    K_128 = _round_up(D_in, 128)

    budget = _vmem_tile_budget_bytes()
    wbytes = jnp.dtype(compute_dtype).itemsize

    # Weight-resident / weight-streamed-once tile choice (roofline-optimal for small & medium
    # FC layers): collapse the N (j) axis whenever the (K-tiled) weight fits comfortably in
    # VMEM, so the weight is DMA'd from HBM exactly once regardless of the batch size.
    if N_128 * K_128 * wbytes <= budget // 3:
        tn, tk = N_128, K_128
    elif N_128 * min(tk_cap, K_128) * wbytes * 2 <= budget // 2:
        tn, tk = N_128, _balanced_tile(K_128, tk_cap, 128)
    else:
        tn = _balanced_tile(N_128, tn_cap, 128)
        tk = _balanced_tile(K_128, tk_cap, 128)

    N_p = _round_up(N_128, tn)
    K_p = _round_up(K_128, tk)

    w_t = jnp.pad(weight, ((0, N_p - D_out), (0, K_p - D_in))).T.astype(compute_dtype)  # (K_p, N_p)
    b = jnp.pad(bias, (0, N_p - D_out)).astype(jnp.float32).reshape(1, N_p)
    return w_t, b, dict(d_out=D_out, tn=tn, tk=tk)


# ----------------------------------------------------------------------------- per-call forward


def fc_unit_forward(x, w_t, b, *, d_out, tn, tk, out_dtype=None, tm_cap=512):
    """x: (B, D_in). w_t/b: outputs of prepare_fc_unit_params. Returns (B, d_out)."""
    B, D_in = x.shape
    K_p, N_p = w_t.shape
    assert D_in <= K_p and d_out <= N_p
    assert N_p % tn == 0 and K_p % tk == 0
    compute_dtype = w_t.dtype
    out_dtype = out_dtype or x.dtype

    xbytes = jnp.dtype(x.dtype).itemsize
    wbytes = jnp.dtype(compute_dtype).itemsize
    obytes = jnp.dtype(out_dtype).itemsize

    # Sublane packing of the MXU dtype: 16 rows for bf16, 8 for f32, 32 for int8/fp8.
    align_m = max(8, 32 // wbytes)

    budget = _vmem_tile_budget_bytes()

    def working_set(tm_):
        return (2 * tm_ * tk * xbytes           # x double buffer (input dtype)
                + 2 * tk * tn * wbytes          # weight double buffer
                + 2 * tm_ * tn * obytes         # output double buffer
                + tm_ * tn * 4                  # f32 accumulator scratch
                + 2 * tn * 4)                   # bias

    tm = _balanced_tile(B, tm_cap, align_m)
    while working_set(tm) > budget and tm > align_m:
        new_tm = _balanced_tile(B, max(align_m, tm // 2), align_m)
        tm = new_tm if new_tm < tm else max(align_m, tm - align_m)

    B_p = _round_up(B, tm)

    # Activations are the only per-call pad (weight/bias already padded at prep time).
    if (B_p, K_p) != (B, D_in):
        x = jnp.pad(x, ((0, B_p - B), (0, K_p - D_in)))

    grid = (B_p // tm, N_p // tn, K_p // tk)

    vmem_cap = _vmem_capacity_bytes()
    vmem_limit = int(min(max(int(working_set(tm) * 1.5), 32 << 20), int(vmem_cap * 0.9)))

    flops = 2 * B_p * K_p * N_p
    bytes_accessed = int(B_p * K_p * xbytes + K_p * N_p * wbytes
                         + N_p * 4 + B_p * N_p * obytes)

    kernel = functools.partial(fc_unit_kernel, mxu_dtype=compute_dtype)

    out_p = pl.pallas_call(
        kernel,
        out_shape=jax.ShapeDtypeStruct((B_p, N_p), out_dtype),
        grid_spec=pltpu.PrefetchScalarGridSpec(
            num_scalar_prefetch=0,
            grid=grid,
            in_specs=[
                pl.BlockSpec((tm, tk), lambda i, j, k: (i, k)),   # x tile
                pl.BlockSpec((tk, tn), lambda i, j, k: (k, j)),   # weight tile, (K, N) layout
                pl.BlockSpec((1, tn), lambda i, j, k: (0, j)),    # bias tile (f32)
            ],
            out_specs=pl.BlockSpec((tm, tn), lambda i, j, k: (i, j)),
            scratch_shapes=[pltpu.VMEM((tm, tn), jnp.float32)],   # K accumulator
        ),
        compiler_params=pltpu.CompilerParams(
            dimension_semantics=("parallel", "parallel", "arbitrary"),
            vmem_limit_bytes=vmem_limit,
        ),
        cost_estimate=pl.CostEstimate(
            flops=flops, transcendentals=0, bytes_accessed=bytes_accessed),
    )(x, w_t, b)

    return out_p[:B, :d_out]


# ----------------------------------------------------------------------------- demo / check


if __name__ == "__main__":
    # FcUnit(num_features=32) with default null_norm / relu / dropout(0.1, eval).
    # NOTE: at this tiny size the call is dominated by per-call overhead; in production,
    # batch many FcUnit invocations into one kernel call to amortize.
    B, D_IN, NUM_FEATURES = 8, 32, 32

    key = jax.random.PRNGKey(0)
    kx, kw, kb = jax.random.split(key, 3)

    x = jax.random.normal(kx, (B, D_IN), dtype=jnp.float32)

    # Deterministic init mimicking nn.Linear defaults: U(-1/sqrt(fan_in), 1/sqrt(fan_in)).
    bound = 1.0 / (D_IN ** 0.5)
    weight = jax.random.uniform(kw, (NUM_FEATURES, D_IN), dtype=jnp.float32,
                                minval=-bound, maxval=bound)
    bias = jax.random.uniform(kb, (NUM_FEATURES,), dtype=jnp.float32,
                              minval=-bound, maxval=bound)

    # One-time parameter prep (pad + transpose + bf16 cast hoisted out of the call path).
    w_t, b_p, meta = prepare_fc_unit_params(weight, bias)

    fwd = jax.jit(functools.partial(fc_unit_forward, **meta))
    out = jax.block_until_ready(fwd(x, w_t, b_p))
    assert out.shape == (B, NUM_FEATURES)

    # Reference with the same bf16 MXU-input cast (f32 accumulation); dropout = identity (eval).
    ref_bf16 = jnp.maximum(
        jnp.dot(x.astype(jnp.bfloat16), weight.astype(jnp.bfloat16).T,
                preferred_element_type=jnp.float32) + bias, 0.0).astype(x.dtype)
    assert jnp.allclose(out, ref_bf16, atol=2e-3, rtol=2e-3)

    # Loose check against the full-f32 reference (bf16 inputs shift numerics slightly).
    ref_f32 = jnp.maximum(x @ weight.T + bias, 0.0)
    assert jnp.allclose(out, ref_f32, atol=5e-2, rtol=5e-2)

    print("KERNEL_OK")
</pallas_src>

<mosaic_0001>
module attributes {stable_mosaic.version = 11 : i64} {
  func.func @fc_unit_kernel(%arg0: i32, %arg1: i32, %arg2: i32, %arg3: memref<16x128xf32, #tpu.memory_space<vmem>>, %arg4: memref<128x128xbf16, #tpu.memory_space<vmem>>, %arg5: memref<1x128xf32, #tpu.memory_space<vmem>>, %arg6: memref<16x128xf32, #tpu.memory_space<vmem>>, %arg7: memref<16x128xf32, #tpu.memory_space<vmem>>) attributes {dimension_semantics = [#tpu.dimension_semantics<parallel>, #tpu.dimension_semantics<parallel>, #tpu.dimension_semantics<arbitrary>], iteration_bounds = array<i64: 1, 1, 1>, scalar_prefetch = 0 : i64, scratch_operands = 1 : i64, tpu.core_type = #tpu.core_type<tc>, window_params = [{transform_indices = @transform_0, window_bounds = array<i64: 16, 128>}, {transform_indices = @transform_1, window_bounds = array<i64: 128, 128>}, {transform_indices = @transform_2, window_bounds = array<i64: 1, 128>}, {transform_indices = @transform_3, window_bounds = array<i64: 16, 128>}]} {
    %c0_i32 = arith.constant 0 : i32
    %0 = arith.cmpi eq, %arg2, %c0_i32 : i32
    %1 = arith.extui %0 : i1 to i32
    %c0_i32_0 = arith.constant 0 : i32
    %2 = arith.cmpi ne, %1, %c0_i32_0 : i32
    scf.if %2 {
      %cst_10 = arith.constant 0.000000e+00 : f32
      %13 = vector.broadcast %cst_10 : f32 to vector<16x128xf32>
      %c0_11 = arith.constant 0 : index
      %c0_12 = arith.constant 0 : index
      %14 = vector.load %arg7[%c0_11, %c0_12] : memref<16x128xf32, #tpu.memory_space<vmem>>, vector<16x128xf32>
      tpu.vector_store %arg7[%c0_11, %c0_12], %13 {strides = array<i32>} : memref<16x128xf32, #tpu.memory_space<vmem>>, vector<16x128xf32>,
    } else {
    }
    %c0 = arith.constant 0 : index
    %c0_1 = arith.constant 0 : index
    %3 = vector.load %arg7[%c0, %c0_1] : memref<16x128xf32, #tpu.memory_space<vmem>>, vector<16x128xf32>
    %c0_2 = arith.constant 0 : index
    %c0_3 = arith.constant 0 : index
    %4 = vector.load %arg3[%c0_2, %c0_3] : memref<16x128xf32, #tpu.memory_space<vmem>>, vector<16x128xf32>
    %5 = arith.truncf %4 : vector<16x128xf32> to vector<16x128xbf16>
    %c0_4 = arith.constant 0 : index
    %c0_5 = arith.constant 0 : index
    %6 = vector.load %arg4[%c0_4, %c0_5] : memref<128x128xbf16, #tpu.memory_space<vmem>>, vector<128x128xbf16>
    %cst = arith.constant dense<0.000000e+00> : vector<16x128xf32>
    %7 = tpu.matmul %5, %6, %cst {dimension_numbers = #tpu.dot_dimension_numbers<[1], [0], [0], [1], [0, 0, 1, 1], [], []>} : vector<16x128xbf16>, vector<128x128xbf16>, vector<16x128xf32> -> vector<16x128xf32>
    %8 = arith.addf %3, %7 : vector<16x128xf32>
    %c0_6 = arith.constant 0 : index
    %c0_7 = arith.constant 0 : index
    %9 = vector.load %arg7[%c0_6, %c0_7] : memref<16x128xf32, #tpu.memory_space<vmem>>, vector<16x128xf32>
    tpu.vector_store %arg7[%c0_6, %c0_7], %8 {strides = array<i32>} : memref<16x128xf32, #tpu.memory_space<vmem>>, vector<16x128xf32>,
    %c0_i32_8 = arith.constant 0 : i32
    %10 = arith.cmpi eq, %arg2, %c0_i32_8 : i32
    %11 = arith.extui %10 : i1 to i32
    %c0_i32_9 = arith.constant 0 : i32
    %12 = arith.cmpi ne, %11, %c0_i32_9 : i32
    scf.if %12 {
      %c0_10 = arith.constant 0 : index
      %c0_11 = arith.constant 0 : index
      %13 = vector.load %arg7[%c0_10, %c0_11] : memref<16x128xf32, #tpu.memory_space<vmem>>, vector<16x128xf32>
      %c0_12 = arith.constant 0 : index
      %c0_13 = arith.constant 0 : index
      %14 = vector.load %arg5[%c0_12, %c0_13] : memref<1x128xf32, #tpu.memory_space<vmem>>, vector<1x128xf32>
      %15 = vector.broadcast %14 : vector<1x128xf32> to vector<16x128xf32>
      %16 = arith.addf %13, %15 : vector<16x128xf32>
      %cst_14 = arith.constant 0.000000e+00 : f32
      %17 = vector.broadcast %cst_14 : f32 to vector<16x128xf32>
      %18 = arith.maximumf %16, %17 : vector<16x128xf32>
      %c0_15 = arith.constant 0 : index
      %c0_16 = arith.constant 0 : index
      %19 = vector.load %arg6[%c0_15, %c0_16] : memref<16x128xf32, #tpu.memory_space<vmem>>, vector<16x128xf32>
      tpu.vector_store %arg6[%c0_15, %c0_16], %18 {strides = array<i32>} : memref<16x128xf32, #tpu.memory_space<vmem>>, vector<16x128xf32>,
    } else {
    }
    return
  }
  func.func @transform_0(%arg0: i32, %arg1: i32, %arg2: i32) -> (i32, i32) {
    %c0_i32 = arith.constant 0 : i32
    return %arg0, %arg2 : i32, i32
  }
  func.func @transform_1(%arg0: i32, %arg1: i32, %arg2: i32) -> (i32, i32) {
    %c0_i32 = arith.constant 0 : i32
    return %arg2, %arg1 : i32, i32
  }
  func.func @transform_2(%arg0: i32, %arg1: i32, %arg2: i32) -> (i32, i32) {
    %c0_i32 = arith.constant 0 : i32
    %c0_i32_0 = arith.constant 0 : i32
    return %c0_i32, %arg1 : i32, i32
  }
  func.func @transform_3(%arg0: i32, %arg1: i32, %arg2: i32) -> (i32, i32) {
    %c0_i32 = arith.constant 0 : i32
    return %arg0, %arg1 : i32, i32
  }
}

</mosaic_0001>

<llo_original>
// kernel: fc_unit_forward.1
$region0: #{fc_unit_forward.1}
  #allocation0 [shape = 'u32[]', space=smem, size = 0x4, offset = 0x4, fixed_abs, tag = 'smem constant byte address 0x4 - core index']
  #allocation1 [shape = 'u32[144,128]{1,0:T(1,128)}', space=vmem, size = 0x12000, scoped, tag = 'internal scratch']
  #allocation2 [shape = 'f32[16,128]{1,0:T(8,128)}', space=vmem, size = 0x2000, scoped, tag = 'scratch operand']
  %s0 = inlined_call_operand.vmem [shape: f32[16,128], index: 0, kind: input, shape index: {}]
  %s1 = inlined_call_operand.hbm [shape: bf16[128,128], index: 1, kind: input, shape index: {}]
  %s2 = inlined_call_operand.vmem [shape: f32[1,128], index: 2, kind: input, shape index: {}]
  %s3 = inlined_call_operand.vmem [shape: f32[16,128], index: 3, kind: output, shape index: {}]
  %s4 = sld [smem:[#allocation0]]
  $region34: #{fc_unit_forward.1} parent=0
    _
  %s6 = ssub.s32 1, %s4
  %s7 = scalar_select 0, %s6, %s4
  $region1: #{fc_unit_forward.1} parent=0
    #allocation3 [shape = 'u8[32768]{0}', space=vmem, size = 0x8000, scoped, tag = 'input window, operand 1, single buffered']
    #allocation4 [shape = 's32[1]{0}', space=sflag, size = 0x4, scoped, tag = 'scoped memory for fc_unit_forward.1']
    %8 = vsyncpa [#allocation4], 0
    // Predicated region
    $region2: #{fc_unit_forward.1} parent=1 // pred_check
      _
    $region3: #{fc_unit_forward.1} parent=1 // pred_check_branch
      %10 = sbr.rel (0) target = $region5
    $region4: #{fc_unit_forward.1} parent=1 // pred_region
      _
    $region5: #{fc_unit_forward.1} parent=1 // pred_fallthru
      _
    // Predicated region
    $region6: #{fc_unit_forward.1} parent=1 // pred_check
      _
    $region7: #{fc_unit_forward.1} parent=1 // pred_check_branch
      %12 = sbr.rel (0) target = $region9
    $region8: #{fc_unit_forward.1} parent=1 // pred_region
      %s14 = ssub.s32 1024, 1024
      %15 = vsyncadd [#allocation4], %s14
      %s16 = sshll.u32 [#allocation3], 4
      %s17 = int_to_ptr.vmem [resolvable:$true] %s16
      %22 = dma.hbm_to_vmem [thread:$0]  %s1, 1024, %s17, [#allocation4], 64, 64, 4
    $region9: #{fc_unit_forward.1} parent=1 // pred_fallthru
      _
    // Predicated region
    $region10: #{fc_unit_forward.1} parent=1 // pred_check
      _
    $region11: #{fc_unit_forward.1} parent=1 // pred_check_branch
      %24 = sbr.rel (0) target = $region13
    $region12: #{fc_unit_forward.1} parent=1 // pred_region
      _
    $region13: #{fc_unit_forward.1} parent=1 // pred_fallthru
      _
    // Predicated region
    $region14: #{fc_unit_forward.1} parent=1 // pred_check
      _
    $region15: #{fc_unit_forward.1} parent=1 // pred_check_branch
      %26 = sbr.rel (0) target = $region17
    $region16: #{fc_unit_forward.1} parent=1 // pred_region
      %27 = dma.done [#allocation4], 1024
    $region17: #{fc_unit_forward.1} parent=1 // pred_fallthru
      _
    %p29 = scmp.eq.s32.totalorder 0, 0
    // Predicated region
    $region18: #{fc_unit_forward.1} parent=1 // pred_check
      %p30 = pneg %p29
    $region19: #{fc_unit_forward.1} parent=1 // pred_check_branch
      %32 = sbr.rel (%p30) target = $region21
    $region20: #{fc_unit_forward.1} parent=1 // pred_region
      %33 = vst [vmem:[#allocation2] sm:$0xff] 0.0
      %34 = vst [vmem:[#allocation2 + $0x8] sm:$0xff] 0.0
    $region21: #{fc_unit_forward.1} parent=1 // pred_fallthru
      _
    %v35 = vld [vmem:[#allocation2] sm:$0xff]
    %v36 = vld [vmem:[#allocation2 + $0x8] sm:$0xff]
    %v37 = vld [vmem:[%s0] sm:$0xff]
    %v38 = vld [vmem:[%s0 + $0x8] sm:$0xff]
    %v39 = vpack.c.bf16 %v38, %v37
    %v40 = vld [vmem:[#allocation3] sm:$0xf]
    %v41 = vld [vmem:[#allocation3 + $0x4] sm:$0xf]
    %v42 = vld [vmem:[#allocation3 + $0x8] sm:$0xf]
    %v43 = vld [vmem:[#allocation3 + $0xc] sm:$0xf]
    %v44 = vld [vmem:[#allocation3 + $0x10] sm:$0xf]
    %v45 = vld [vmem:[#allocation3 + $0x14] sm:$0xf]
    %v46 = vld [vmem:[#allocation3 + $0x18] sm:$0xf]
    %v47 = vld [vmem:[#allocation3 + $0x1c] sm:$0xf]
    %v48 = vld [vmem:[#allocation3 + $0x20] sm:$0xf]
    %v49 = vld [vmem:[#allocation3 + $0x24] sm:$0xf]
    %v50 = vld [vmem:[#allocation3 + $0x28] sm:$0xf]
    %v51 = vld [vmem:[#allocation3 + $0x2c] sm:$0xf]
    %v52 = vld [vmem:[#allocation3 + $0x30] sm:$0xf]
    %v53 = vld [vmem:[#allocation3 + $0x34] sm:$0xf]
    %v54 = vld [vmem:[#allocation3 + $0x38] sm:$0xf]
    %v55 = vld [vmem:[#allocation3 + $0x3c] sm:$0xf]
    %v72 = vunpack.c.l.b16 %v40
    %v73 = vunpack.c.l.b16 %v41
    %v74 = vunpack.c.l.b16 %v42
    %v75 = vunpack.c.l.b16 %v43
    %v76 = vunpack.c.l.b16 %v44
    %v77 = vunpack.c.l.b16 %v45
    %v78 = vunpack.c.l.b16 %v46
    %v79 = vunpack.c.l.b16 %v47
    %v80 = vunpack.c.l.b16 %v48
    %v81 = vunpack.c.l.b16 %v49
    %v82 = vunpack.c.l.b16 %v50
    %v83 = vunpack.c.l.b16 %v51
    %v84 = vunpack.c.l.b16 %v52
    %v85 = vunpack.c.l.b16 %v53
    %v86 = vunpack.c.l.b16 %v54
    %v87 = vunpack.c.l.b16 %v55
    %v88 = vpack.c.b16 %v73, %v72
    %v89 = vpack.c.b16 %v75, %v74
    %v90 = vpack.c.b16 %v77, %v76
    %v91 = vpack.c.b16 %v79, %v78
    %v92 = vpack.c.b16 %v81, %v80
    %v93 = vpack.c.b16 %v83, %v82
    %v94 = vpack.c.b16 %v85, %v84
    %v95 = vpack.c.b16 %v87, %v86
    %104 = vmatprep.subr.bf16.mxu0 0
    %105 = vmatpush1.bf16.msra.mxu0 %v88
    %106 = vmatprep.subr.bf16.mxu0 0
    %107 = vmatpush1.bf16.msra.mxu0 %v89
    %108 = vmatprep.subr.bf16.mxu0 0
    %109 = vmatpush1.bf16.msra.mxu0 %v90
    %110 = vmatprep.subr.bf16.mxu0 0
    %111 = vmatpush1.bf16.msra.mxu0 %v91
    %112 = vmatprep.subr.bf16.mxu0 0
    %113 = vmatpush1.bf16.msra.mxu0 %v92
    %114 = vmatprep.subr.bf16.mxu0 0
    %115 = vmatpush1.bf16.msra.mxu0 %v93
    %116 = vmatprep.subr.bf16.mxu0 0
    %117 = vmatpush1.bf16.msra.mxu0 %v94
    %118 = vmatprep.subr.bf16.mxu0 0
    %119 = vmatpush1.bf16.msra.mxu0 %v95
    %120 = vmatprep.subr.bf16.mxu0 0
    %121 = vmatpush1.bf16.msra.mxu0 0
    %122 = vmatprep.subr.bf16.mxu0 0
    %123 = vmatpush1.bf16.msra.mxu0 0
    %124 = vmatprep.subr.bf16.mxu0 0
    %125 = vmatpush1.bf16.msra.mxu0 0
    %126 = vmatprep.subr.bf16.mxu0 0
    %127 = vmatpush1.bf16.msra.mxu0 0
    %128 = vmatprep.subr.bf16.mxu0 0
    %129 = vmatpush1.bf16.msra.mxu0 0
    %130 = vmatprep.subr.bf16.mxu0 0
    %131 = vmatpush1.bf16.msra.mxu0 0
    %132 = vmatprep.subr.bf16.mxu0 0
    %133 = vmatpush1.bf16.msra.mxu0 0
    %134 = vmatprep.subr.bf16.mxu0 0
    %135 = vmatpush1.bf16.msra.mxu0 0
    %136 = vmatprep.mubr.bf16.mxu0 0
    %137 = vmatmul.mubr.bf16.gmra.mrb[0].mxu0 %v39
    %v138 = vpop.f32.mrb[0].mxu0
    %v139 = vadd.f32 0.0, %v138
    %v140 = vpop.f32.mrb[0].mxu0
    %v141 = vpop.f32.mrb[0].mxu0
    %v142 = vadd.f32 0.0, %v141
    %v143 = vpop.f32.mrb[0].mxu0
    %144 = vdwg.mxu0
    %v145 = vadd.f32 %v35, %v139
    %v146 = vadd.f32 %v36, %v142
    %147 = vst [vmem:[#allocation2] sm:$0xff] %v145
    %148 = vst [vmem:[#allocation2 + $0x8] sm:$0xff] %v146
    // Predicated region
    $region22: #{fc_unit_forward.1} parent=1 // pred_check
      %p149 = pneg %p29
    $region23: #{fc_unit_forward.1} parent=1 // pred_check_branch
      %151 = sbr.rel (%p149) target = $region25
    $region24: #{fc_unit_forward.1} parent=1 // pred_region
      %v152 = vld [vmem:[#allocation2] sm:$0xff]
      %v153 = vld [vmem:[#allocation2 + $0x8] sm:$0xff]
      %v154 = vld [vmem:[%s2] sm:$0x1]
      %v156 = vlaneseq
      %v157 = vshrl.u32 %v156, 7
      %v158 = vsub.s32 0, %v157
      %v159 = vrot.slane %v154, %v158
      %v161 = vadd.f32 %v152, %v159
      %v162 = vadd.f32 %v153, %v159
      %v163 = vmax.f32 %v161, 0.0
      %v164 = vmax.f32 %v162, 0.0
      %165 = vst [vmem:[%s3] sm:$0xff] %v163
      %166 = vst [vmem:[%s3 + $0x8] sm:$0xff] %v164
    $region25: #{fc_unit_forward.1} parent=1 // pred_fallthru
      _
    // Predicated region
    $region26: #{fc_unit_forward.1} parent=1 // pred_check
      _
    $region27: #{fc_unit_forward.1} parent=1 // pred_check_branch
      %168 = sbr.rel (0) target = $region29
    $region28: #{fc_unit_forward.1} parent=1 // pred_region
      _
    $region29: #{fc_unit_forward.1} parent=1 // pred_fallthru
      _
    // Predicated region
    $region30: #{fc_unit_forward.1} parent=1 // pred_check
      _
    $region31: #{fc_unit_forward.1} parent=1 // pred_check_branch
      %170 = sbr.rel (0) target = $region33
    $region32: #{fc_unit_forward.1} parent=1 // pred_region
      _
    $region33: #{fc_unit_forward.1} parent=1 // pred_fallthru
      _
    %171 = vsyncpa [#allocation4], 1

</llo_original>
